<compile_context>
chip_gen: v5e
topology: v5e:2x2
jax: 0.10.0
libtpu: 0.0.40
codegen_flags: <defaults>
</compile_context>

<pallas_src>
import functools

import jax
import jax.numpy as jnp
from jax.experimental import pallas as pl
from jax.experimental.pallas import tpu as pltpu

LANE = 128      # pad every feature dim to a multiple of the 128-wide lane axis
SUBLANE = 8     # batch tiles are multiples of the sublane width


def _round_up(n, m):
    return (n + m - 1) // m * m


# ----------------------------------------------------------------------------
# Kernel: one batch tile through the whole encoder/decoder stack.
# ----------------------------------------------------------------------------
def autoencoder_kernel(x_ref,
                       w1, b1, w2, b2, w3, b3,   # encoder
                       w4, b4, w5, b5, w6, b6,   # decoder
                       out_ref):
    def dense(h, w_ref, b_ref):
        # MXU matmul, f32 accumulation; epilogue in the bias dtype
        # (bf16 on v6e/v7x, f32 on v5e).  h.astype is a no-op when the
        # previous epilogue already produced bf16.
        acc = jnp.dot(h.astype(w_ref.dtype), w_ref[...],
                      preferred_element_type=jnp.float32)
        return acc.astype(b_ref.dtype) + b_ref[...]

    h = x_ref[...]                               # bf16 batch tile

    # ---------------- encoder ----------------
    h = jnp.maximum(dense(h, w1, b1), 0.0)       # Linear + ReLU
    h = jnp.maximum(dense(h, w2, b2), 0.0)       # Linear + ReLU
    h = dense(h, w3, b3)                         # Linear (latent)

    # ---------------- decoder ----------------
    h = jnp.maximum(dense(h, w4, b4), 0.0)       # Linear + ReLU
    h = jnp.maximum(dense(h, w5, b5), 0.0)       # Linear + ReLU

    # Final Linear: keep the f32 accumulator for the output layer.
    acc = jnp.dot(h.astype(w6.dtype), w6[...],
                  preferred_element_type=jnp.float32)
    acc = acc + b6[...].astype(jnp.float32)

    # Sigmoid as 0.5*tanh(0.5*x)+0.5: one EUP op + one VPU fma per element.
    out_ref[...] = (0.5 * jnp.tanh(0.5 * acc) + 0.5).astype(out_ref.dtype)


# ----------------------------------------------------------------------------
# Parameter construction / packing.
# ----------------------------------------------------------------------------
def init_params(key, input_dim, hidden_dim, latent_dim):
    """PyTorch-style uniform init. Weights (in_dim, out_dim) f32, biases (out_dim,)."""
    dims = [
        (input_dim, hidden_dim),          # encoder Linear 1
        (hidden_dim, hidden_dim // 2),    # encoder Linear 2
        (hidden_dim // 2, latent_dim),    # encoder Linear 3
        (latent_dim, hidden_dim // 2),    # decoder Linear 1
        (hidden_dim // 2, hidden_dim),    # decoder Linear 2
        (hidden_dim, input_dim),          # decoder Linear 3
    ]
    params = []
    for d_in, d_out in dims:
        key, kw, kb = jax.random.split(key, 3)
        bound = 1.0 / float(d_in) ** 0.5
        w = jax.random.uniform(kw, (d_in, d_out), jnp.float32, -bound, bound)
        b = jax.random.uniform(kb, (d_out,), jnp.float32, -bound, bound)
        params += [w, b]
    return params


def pack_params(params, weight_dtype=jnp.bfloat16, bias_dtype=jnp.bfloat16):
    """Zero-pad all feature dims to multiples of 128 lanes.  Weights are cast
    to an MXU-native dtype; biases to the elementwise-epilogue dtype (bf16 on
    v6e/v7x, f32 on v5e).  Padded lanes are zero so padded columns carry
    exactly 0 through the ReLU layers."""
    packed = []
    for i in range(0, len(params), 2):
        w, b = params[i], params[i + 1]
        d_in, d_out = w.shape
        in_pad, out_pad = _round_up(d_in, LANE), _round_up(d_out, LANE)
        w_p = jnp.pad(w, ((0, in_pad - d_in), (0, out_pad - d_out)))
        b_p = jnp.pad(b, (0, out_pad - d_out)).reshape(1, out_pad)
        packed += [w_p.astype(weight_dtype), b_p.astype(bias_dtype)]
    return packed


# ----------------------------------------------------------------------------
# Wrapper.
# ----------------------------------------------------------------------------
@functools.partial(jax.jit, static_argnames=("tile_b",))
def autoencoder_forward(x, packed_params, *, tile_b=512):
    """x: (B, input_dim) f32; packed_params: output of pack_params()."""
    B, input_dim = x.shape
    in_pad = packed_params[0].shape[0]        # padded input feature dim
    out_pad = packed_params[-2].shape[1]      # padded output feature dim

    # Batch tile: large (512) for MXU fill, multiple of 8, and sized so the
    # batch grid has >= 2 steps whenever possible (feeds both v7x TCs).
    b_ceil = _round_up(B, SUBLANE)
    if b_ceil >= 2 * SUBLANE:
        tile_b = min(tile_b, _round_up(pl.cdiv(b_ceil, 2), SUBLANE))
    else:
        tile_b = b_ceil
    b_pad = _round_up(b_ceil, tile_b)

    # bf16 input: halves the per-step DMA of the only streamed operand.
    x_p = jnp.pad(x.astype(jnp.bfloat16),
                  ((0, b_pad - B), (0, in_pad - input_dim)))

    grid = (b_pad // tile_b,)

    x_spec = pl.BlockSpec((tile_b, in_pad), lambda i: (i, 0))
    out_spec = pl.BlockSpec((tile_b, out_pad), lambda i: (i, 0))
    # Constant block index -> params DMA'd once and stay VMEM-resident.
    # Buffered(1): no second (never-used) pipeline buffer for them.
    param_specs = [pl.BlockSpec(p.shape, lambda i: (0, 0),
                                pipeline_mode=pl.Buffered(1))
                   for p in packed_params]

    # Cost estimate + explicit VMEM budget.
    flops = 0
    param_bytes = 0
    for i in range(0, len(packed_params), 2):
        d_in, d_out = packed_params[i].shape
        flops += 2 * b_pad * d_in * d_out
    for p in packed_params:
        param_bytes += p.size * p.dtype.itemsize

    x_bytes = x_p.size * x_p.dtype.itemsize
    out_bytes = b_pad * out_pad * 4
    x_tile_bytes = tile_b * in_pad * 2
    out_tile_bytes = tile_b * out_pad * 4
    vmem_needed = 2 * x_tile_bytes + 2 * out_tile_bytes + param_bytes
    vmem_limit = int(max(2 * vmem_needed + (4 << 20), 16 << 20))
    vmem_limit = min(vmem_limit, 64 << 20)    # stay inside v7x physical VMEM

    out = pl.pallas_call(
        autoencoder_kernel,
        out_shape=jax.ShapeDtypeStruct((b_pad, out_pad), jnp.float32),
        grid=grid,
        in_specs=[x_spec] + param_specs,
        out_specs=out_spec,
        compiler_params=pltpu.CompilerParams(
            dimension_semantics=("parallel",),
            vmem_limit_bytes=vmem_limit),
        cost_estimate=pl.CostEstimate(
            flops=flops,
            transcendentals=b_pad * out_pad,                 # one tanh / elem
            bytes_accessed=x_bytes + out_bytes + param_bytes),
    )(x_p, *packed_params)

    return out[:B, :input_dim]


# ----------------------------------------------------------------------------
# Pure-JAX reference (f32, unpadded) for correctness checking.
# ----------------------------------------------------------------------------
def reference_forward(x, params):
    w1, b1, w2, b2, w3, b3, w4, b4, w5, b5, w6, b6 = params
    h = jnp.maximum(x @ w1 + b1, 0.0)
    h = jnp.maximum(h @ w2 + b2, 0.0)
    h = h @ w3 + b3
    h = jnp.maximum(h @ w4 + b4, 0.0)
    h = jnp.maximum(h @ w5 + b5, 0.0)
    h = h @ w6 + b6
    return jax.nn.sigmoid(h)


if __name__ == "__main__":
    # Small shapes consistent with the module's forward (x: (B, input_dim)).
    batch, input_dim, hidden_dim, latent_dim = 8, 32, 32, 8

    key = jax.random.PRNGKey(0)
    key, kx = jax.random.split(key)
    x = jax.random.normal(kx, (batch, input_dim), jnp.float32)

    # bf16 bias/ReLU epilogue on bf16-native VPUs (v6e/v7x); f32 on v5e.
    kind = jax.devices()[0].device_kind.lower()
    is_v5e = ("v5 lite" in kind) or ("v5e" in kind) or ("v5lite" in kind)
    bias_dtype = jnp.float32 if is_v5e else jnp.bfloat16

    params = init_params(key, input_dim, hidden_dim, latent_dim)
    packed = pack_params(params, weight_dtype=jnp.bfloat16,
                         bias_dtype=bias_dtype)

    out = autoencoder_forward(x, packed)
    out = jax.block_until_ready(out)

    ref = reference_forward(x, params)        # f32 reference
    assert out.shape == (batch, input_dim)
    # bf16 MXU operands / bf16 epilogue => loose-but-meaningful check against
    # the full-precision reference (sigmoid outputs live in [0, 1]).
    assert jnp.max(jnp.abs(out - ref)) < 2e-2, float(jnp.max(jnp.abs(out - ref)))

    print("KERNEL_OK")
</pallas_src>

<mosaic_0001>
module attributes {stable_mosaic.version = 11 : i64} {
  func.func @autoencoder_kernel(%arg0: i32, %arg1: memref<8x128xbf16, #tpu.memory_space<vmem>>, %arg2: memref<128x128xbf16, #tpu.memory_space<vmem>>, %arg3: memref<1x128xbf16, #tpu.memory_space<vmem>>, %arg4: memref<128x128xbf16, #tpu.memory_space<vmem>>, %arg5: memref<1x128xbf16, #tpu.memory_space<vmem>>, %arg6: memref<128x128xbf16, #tpu.memory_space<vmem>>, %arg7: memref<1x128xbf16, #tpu.memory_space<vmem>>, %arg8: memref<128x128xbf16, #tpu.memory_space<vmem>>, %arg9: memref<1x128xbf16, #tpu.memory_space<vmem>>, %arg10: memref<128x128xbf16, #tpu.memory_space<vmem>>, %arg11: memref<1x128xbf16, #tpu.memory_space<vmem>>, %arg12: memref<128x128xbf16, #tpu.memory_space<vmem>>, %arg13: memref<1x128xbf16, #tpu.memory_space<vmem>>, %arg14: memref<8x128xf32, #tpu.memory_space<vmem>>) attributes {dimension_semantics = [#tpu.dimension_semantics<parallel>], iteration_bounds = array<i64: 1>, scalar_prefetch = 0 : i64, scratch_operands = 0 : i64, tpu.core_type = #tpu.core_type<tc>, window_params = [{transform_indices = @transform_0, window_bounds = array<i64: 8, 128>}, {pipeline_mode = #tpu.pipeline_mode<synchronous>, transform_indices = @transform_1, window_bounds = array<i64: 128, 128>}, {pipeline_mode = #tpu.pipeline_mode<synchronous>, transform_indices = @transform_2, window_bounds = array<i64: 1, 128>}, {pipeline_mode = #tpu.pipeline_mode<synchronous>, transform_indices = @transform_3, window_bounds = array<i64: 128, 128>}, {pipeline_mode = #tpu.pipeline_mode<synchronous>, transform_indices = @transform_4, window_bounds = array<i64: 1, 128>}, {pipeline_mode = #tpu.pipeline_mode<synchronous>, transform_indices = @transform_5, window_bounds = array<i64: 128, 128>}, {pipeline_mode = #tpu.pipeline_mode<synchronous>, transform_indices = @transform_6, window_bounds = array<i64: 1, 128>}, {pipeline_mode = #tpu.pipeline_mode<synchronous>, transform_indices = @transform_7, window_bounds = array<i64: 128, 128>}, {pipeline_mode = #tpu.pipeline_mode<synchronous>, transform_indices = @transform_8, window_bounds = array<i64: 1, 128>}, {pipeline_mode = #tpu.pipeline_mode<synchronous>, transform_indices = @transform_9, window_bounds = array<i64: 128, 128>}, {pipeline_mode = #tpu.pipeline_mode<synchronous>, transform_indices = @transform_10, window_bounds = array<i64: 1, 128>}, {pipeline_mode = #tpu.pipeline_mode<synchronous>, transform_indices = @transform_11, window_bounds = array<i64: 128, 128>}, {pipeline_mode = #tpu.pipeline_mode<synchronous>, transform_indices = @transform_12, window_bounds = array<i64: 1, 128>}, {transform_indices = @transform_13, window_bounds = array<i64: 8, 128>}]} {
    %c0 = arith.constant 0 : index
    %c0_0 = arith.constant 0 : index
    %0 = vector.load %arg1[%c0, %c0_0] : memref<8x128xbf16, #tpu.memory_space<vmem>>, vector<8x128xbf16>
    %c0_1 = arith.constant 0 : index
    %c0_2 = arith.constant 0 : index
    %1 = vector.load %arg2[%c0_1, %c0_2] : memref<128x128xbf16, #tpu.memory_space<vmem>>, vector<128x128xbf16>
    %cst = arith.constant dense<0.000000e+00> : vector<8x128xf32>
    %2 = tpu.matmul %0, %1, %cst {dimension_numbers = #tpu.dot_dimension_numbers<[1], [0], [0], [1], [0, 0, 1, 1], [], []>} : vector<8x128xbf16>, vector<128x128xbf16>, vector<8x128xf32> -> vector<8x128xf32>
    %3 = arith.truncf %2 : vector<8x128xf32> to vector<8x128xbf16>
    %c0_3 = arith.constant 0 : index
    %c0_4 = arith.constant 0 : index
    %4 = vector.load %arg3[%c0_3, %c0_4] : memref<1x128xbf16, #tpu.memory_space<vmem>>, vector<1x128xbf16>
    %5 = vector.broadcast %4 : vector<1x128xbf16> to vector<8x128xbf16>
    %6 = arith.addf %3, %5 : vector<8x128xbf16>
    %cst_5 = arith.constant 0.000000e+00 : bf16
    %7 = vector.broadcast %cst_5 : bf16 to vector<8x128xbf16>
    %8 = arith.maximumf %6, %7 : vector<8x128xbf16>
    %c0_6 = arith.constant 0 : index
    %c0_7 = arith.constant 0 : index
    %9 = vector.load %arg4[%c0_6, %c0_7] : memref<128x128xbf16, #tpu.memory_space<vmem>>, vector<128x128xbf16>
    %cst_8 = arith.constant dense<0.000000e+00> : vector<8x128xf32>
    %10 = tpu.matmul %8, %9, %cst_8 {dimension_numbers = #tpu.dot_dimension_numbers<[1], [0], [0], [1], [0, 0, 1, 1], [], []>} : vector<8x128xbf16>, vector<128x128xbf16>, vector<8x128xf32> -> vector<8x128xf32>
    %11 = arith.truncf %10 : vector<8x128xf32> to vector<8x128xbf16>
    %c0_9 = arith.constant 0 : index
    %c0_10 = arith.constant 0 : index
    %12 = vector.load %arg5[%c0_9, %c0_10] : memref<1x128xbf16, #tpu.memory_space<vmem>>, vector<1x128xbf16>
    %13 = vector.broadcast %12 : vector<1x128xbf16> to vector<8x128xbf16>
    %14 = arith.addf %11, %13 : vector<8x128xbf16>
    %cst_11 = arith.constant 0.000000e+00 : bf16
    %15 = vector.broadcast %cst_11 : bf16 to vector<8x128xbf16>
    %16 = arith.maximumf %14, %15 : vector<8x128xbf16>
    %c0_12 = arith.constant 0 : index
    %c0_13 = arith.constant 0 : index
    %17 = vector.load %arg6[%c0_12, %c0_13] : memref<128x128xbf16, #tpu.memory_space<vmem>>, vector<128x128xbf16>
    %cst_14 = arith.constant dense<0.000000e+00> : vector<8x128xf32>
    %18 = tpu.matmul %16, %17, %cst_14 {dimension_numbers = #tpu.dot_dimension_numbers<[1], [0], [0], [1], [0, 0, 1, 1], [], []>} : vector<8x128xbf16>, vector<128x128xbf16>, vector<8x128xf32> -> vector<8x128xf32>
    %19 = arith.truncf %18 : vector<8x128xf32> to vector<8x128xbf16>
    %c0_15 = arith.constant 0 : index
    %c0_16 = arith.constant 0 : index
    %20 = vector.load %arg7[%c0_15, %c0_16] : memref<1x128xbf16, #tpu.memory_space<vmem>>, vector<1x128xbf16>
    %21 = vector.broadcast %20 : vector<1x128xbf16> to vector<8x128xbf16>
    %22 = arith.addf %19, %21 : vector<8x128xbf16>
    %c0_17 = arith.constant 0 : index
    %c0_18 = arith.constant 0 : index
    %23 = vector.load %arg8[%c0_17, %c0_18] : memref<128x128xbf16, #tpu.memory_space<vmem>>, vector<128x128xbf16>
    %cst_19 = arith.constant dense<0.000000e+00> : vector<8x128xf32>
    %24 = tpu.matmul %22, %23, %cst_19 {dimension_numbers = #tpu.dot_dimension_numbers<[1], [0], [0], [1], [0, 0, 1, 1], [], []>} : vector<8x128xbf16>, vector<128x128xbf16>, vector<8x128xf32> -> vector<8x128xf32>
    %25 = arith.truncf %24 : vector<8x128xf32> to vector<8x128xbf16>
    %c0_20 = arith.constant 0 : index
    %c0_21 = arith.constant 0 : index
    %26 = vector.load %arg9[%c0_20, %c0_21] : memref<1x128xbf16, #tpu.memory_space<vmem>>, vector<1x128xbf16>
    %27 = vector.broadcast %26 : vector<1x128xbf16> to vector<8x128xbf16>
    %28 = arith.addf %25, %27 : vector<8x128xbf16>
    %cst_22 = arith.constant 0.000000e+00 : bf16
    %29 = vector.broadcast %cst_22 : bf16 to vector<8x128xbf16>
    %30 = arith.maximumf %28, %29 : vector<8x128xbf16>
    %c0_23 = arith.constant 0 : index
    %c0_24 = arith.constant 0 : index
    %31 = vector.load %arg10[%c0_23, %c0_24] : memref<128x128xbf16, #tpu.memory_space<vmem>>, vector<128x128xbf16>
    %cst_25 = arith.constant dense<0.000000e+00> : vector<8x128xf32>
    %32 = tpu.matmul %30, %31, %cst_25 {dimension_numbers = #tpu.dot_dimension_numbers<[1], [0], [0], [1], [0, 0, 1, 1], [], []>} : vector<8x128xbf16>, vector<128x128xbf16>, vector<8x128xf32> -> vector<8x128xf32>
    %33 = arith.truncf %32 : vector<8x128xf32> to vector<8x128xbf16>
    %c0_26 = arith.constant 0 : index
    %c0_27 = arith.constant 0 : index
    %34 = vector.load %arg11[%c0_26, %c0_27] : memref<1x128xbf16, #tpu.memory_space<vmem>>, vector<1x128xbf16>
    %35 = vector.broadcast %34 : vector<1x128xbf16> to vector<8x128xbf16>
    %36 = arith.addf %33, %35 : vector<8x128xbf16>
    %cst_28 = arith.constant 0.000000e+00 : bf16
    %37 = vector.broadcast %cst_28 : bf16 to vector<8x128xbf16>
    %38 = arith.maximumf %36, %37 : vector<8x128xbf16>
    %c0_29 = arith.constant 0 : index
    %c0_30 = arith.constant 0 : index
    %39 = vector.load %arg12[%c0_29, %c0_30] : memref<128x128xbf16, #tpu.memory_space<vmem>>, vector<128x128xbf16>
    %cst_31 = arith.constant dense<0.000000e+00> : vector<8x128xf32>
    %40 = tpu.matmul %38, %39, %cst_31 {dimension_numbers = #tpu.dot_dimension_numbers<[1], [0], [0], [1], [0, 0, 1, 1], [], []>} : vector<8x128xbf16>, vector<128x128xbf16>, vector<8x128xf32> -> vector<8x128xf32>
    %c0_32 = arith.constant 0 : index
    %c0_33 = arith.constant 0 : index
    %41 = vector.load %arg13[%c0_32, %c0_33] : memref<1x128xbf16, #tpu.memory_space<vmem>>, vector<1x128xbf16>
    %42 = arith.extf %41 : vector<1x128xbf16> to vector<1x128xf32>
    %43 = vector.broadcast %42 : vector<1x128xf32> to vector<8x128xf32>
    %44 = arith.addf %40, %43 : vector<8x128xf32>
    %cst_34 = arith.constant 5.000000e-01 : f32
    %45 = vector.broadcast %cst_34 : f32 to vector<8x128xf32>
    %46 = arith.mulf %45, %44 : vector<8x128xf32>
    %47 = math.tanh %46 : vector<8x128xf32>
    %cst_35 = arith.constant 5.000000e-01 : f32
    %48 = vector.broadcast %cst_35 : f32 to vector<8x128xf32>
    %49 = arith.mulf %48, %47 : vector<8x128xf32>
    %cst_36 = arith.constant 5.000000e-01 : f32
    %50 = vector.broadcast %cst_36 : f32 to vector<8x128xf32>
    %51 = arith.addf %49, %50 : vector<8x128xf32>
    %c0_37 = arith.constant 0 : index
    %c0_38 = arith.constant 0 : index
    %52 = vector.load %arg14[%c0_37, %c0_38] : memref<8x128xf32, #tpu.memory_space<vmem>>, vector<8x128xf32>
    tpu.vector_store %arg14[%c0_37, %c0_38], %51 {strides = array<i32>} : memref<8x128xf32, #tpu.memory_space<vmem>>, vector<8x128xf32>,
    return
  }
  func.func @transform_0(%arg0: i32) -> (i32, i32) {
    %c0_i32 = arith.constant 0 : i32
    %c0_i32_0 = arith.constant 0 : i32
    return %arg0, %c0_i32 : i32, i32
  }
  func.func @transform_1(%arg0: i32) -> (i32, i32) {
    %c0_i32 = arith.constant 0 : i32
    %c0_i32_0 = arith.constant 0 : i32
    %c0_i32_1 = arith.constant 0 : i32
    return %c0_i32, %c0_i32_0 : i32, i32
  }
  func.func @transform_2(%arg0: i32) -> (i32, i32) {
    %c0_i32 = arith.constant 0 : i32
    %c0_i32_0 = arith.constant 0 : i32
    %c0_i32_1 = arith.constant 0 : i32
    return %c0_i32, %c0_i32_0 : i32, i32
  }
  func.func @transform_3(%arg0: i32) -> (i32, i32) {
    %c0_i32 = arith.constant 0 : i32
    %c0_i32_0 = arith.constant 0 : i32
    %c0_i32_1 = arith.constant 0 : i32
    return %c0_i32, %c0_i32_0 : i32, i32
  }
  func.func @transform_4(%arg0: i32) -> (i32, i32) {
    %c0_i32 = arith.constant 0 : i32
    %c0_i32_0 = arith.constant 0 : i32
    %c0_i32_1 = arith.constant 0 : i32
    return %c0_i32, %c0_i32_0 : i32, i32
  }
  func.func @transform_5(%arg0: i32) -> (i32, i32) {
    %c0_i32 = arith.constant 0 : i32
    %c0_i32_0 = arith.constant 0 : i32
    %c0_i32_1 = arith.constant 0 : i32
    return %c0_i32, %c0_i32_0 : i32, i32
  }
  func.func @transform_6(%arg0: i32) -> (i32, i32) {
    %c0_i32 = arith.constant 0 : i32
    %c0_i32_0 = arith.constant 0 : i32
    %c0_i32_1 = arith.constant 0 : i32
    return %c0_i32, %c0_i32_0 : i32, i32
  }
  func.func @transform_7(%arg0: i32) -> (i32, i32) {
    %c0_i32 = arith.constant 0 : i32
    %c0_i32_0 = arith.constant 0 : i32
    %c0_i32_1 = arith.constant 0 : i32
    return %c0_i32, %c0_i32_0 : i32, i32
  }
  func.func @transform_8(%arg0: i32) -> (i32, i32) {
    %c0_i32 = arith.constant 0 : i32
    %c0_i32_0 = arith.constant 0 : i32
    %c0_i32_1 = arith.constant 0 : i32
    return %c0_i32, %c0_i32_0 : i32, i32
  }
  func.func @transform_9(%arg0: i32) -> (i32, i32) {
    %c0_i32 = arith.constant 0 : i32
    %c0_i32_0 = arith.constant 0 : i32
    %c0_i32_1 = arith.constant 0 : i32
    return %c0_i32, %c0_i32_0 : i32, i32
  }
  func.func @transform_10(%arg0: i32) -> (i32, i32) {
    %c0_i32 = arith.constant 0 : i32
    %c0_i32_0 = arith.constant 0 : i32
    %c0_i32_1 = arith.constant 0 : i32
    return %c0_i32, %c0_i32_0 : i32, i32
  }
  func.func @transform_11(%arg0: i32) -> (i32, i32) {
    %c0_i32 = arith.constant 0 : i32
    %c0_i32_0 = arith.constant 0 : i32
    %c0_i32_1 = arith.constant 0 : i32
    return %c0_i32, %c0_i32_0 : i32, i32
  }
  func.func @transform_12(%arg0: i32) -> (i32, i32) {
    %c0_i32 = arith.constant 0 : i32
    %c0_i32_0 = arith.constant 0 : i32
    %c0_i32_1 = arith.constant 0 : i32
    return %c0_i32, %c0_i32_0 : i32, i32
  }
  func.func @transform_13(%arg0: i32) -> (i32, i32) {
    %c0_i32 = arith.constant 0 : i32
    %c0_i32_0 = arith.constant 0 : i32
    return %arg0, %c0_i32 : i32, i32
  }
}

</mosaic_0001>

<llo_original>
// kernel: autoencoder_forward.1
$region0: #{autoencoder_forward.1}
  #allocation0 [shape = 'u32[]', space=smem, size = 0x4, offset = 0x4, fixed_abs, tag = 'smem constant byte address 0x4 - core index']
  #allocation1 [shape = 'u32[72,128]{1,0:T(1,128)}', space=vmem, size = 0x9000, scoped, tag = 'internal scratch']
  %s0 = inlined_call_operand.vmem [shape: bf16[8,128], index: 0, kind: input, shape index: {}]
  %s1 = inlined_call_operand.hbm [shape: bf16[128,128], index: 1, kind: input, shape index: {}]
  %s2 = inlined_call_operand.vmem [shape: bf16[1,128], index: 2, kind: input, shape index: {}]
  %s3 = inlined_call_operand.hbm [shape: bf16[128,128], index: 3, kind: input, shape index: {}]
  %s4 = inlined_call_operand.vmem [shape: bf16[1,128], index: 4, kind: input, shape index: {}]
  %s5 = inlined_call_operand.hbm [shape: bf16[128,128], index: 5, kind: input, shape index: {}]
  %s6 = inlined_call_operand.vmem [shape: bf16[1,128], index: 6, kind: input, shape index: {}]
  %s7 = inlined_call_operand.hbm [shape: bf16[128,128], index: 7, kind: input, shape index: {}]
  %s8 = inlined_call_operand.vmem [shape: bf16[1,128], index: 8, kind: input, shape index: {}]
  %s9 = inlined_call_operand.hbm [shape: bf16[128,128], index: 9, kind: input, shape index: {}]
  %s10 = inlined_call_operand.vmem [shape: bf16[1,128], index: 10, kind: input, shape index: {}]
  %s11 = inlined_call_operand.hbm [shape: bf16[128,128], index: 11, kind: input, shape index: {}]
  %s12 = inlined_call_operand.vmem [shape: bf16[1,128], index: 12, kind: input, shape index: {}]
  %s13 = inlined_call_operand.hbm [shape: f32[8,128], index: 13, kind: output, shape index: {}]
  %s14 = sld [smem:[#allocation0]]
  $region86: #{autoencoder_forward.1} parent=0
    _
  %s16 = ssub.s32 1, %s14
  %s17 = scalar_select 0, %s16, %s14
  $region1: #{autoencoder_forward.1} parent=0
    #allocation2 [shape = 'u8[32768]{0}', space=vmem, size = 0x8000, scoped, tag = 'input window, operand 1, single buffered']
    #allocation3 [shape = 's32[1]{0}', space=sflag, size = 0x4, scoped, tag = 'scoped memory for autoencoder_forward.1']
    #allocation4 [shape = 's32[1]{0}', space=sflag, size = 0x4, scoped, tag = 'scoped memory for autoencoder_forward.1']
    #allocation5 [shape = 'u8[32768]{0}', space=vmem, size = 0x8000, scoped, tag = 'input window, operand 3, single buffered']
    #allocation6 [shape = 's32[1]{0}', space=sflag, size = 0x4, scoped, tag = 'scoped memory for autoencoder_forward.1']
    #allocation7 [shape = 'u8[32768]{0}', space=vmem, size = 0x8000, scoped, tag = 'input window, operand 5, single buffered']
    #allocation8 [shape = 'u8[32768]{0}', space=vmem, size = 0x8000, scoped, tag = 'input window, operand 7, single buffered']
    #allocation9 [shape = 's32[1]{0}', space=sflag, size = 0x4, scoped, tag = 'scoped memory for autoencoder_forward.1']
    #allocation10 [shape = 'u8[32768]{0}', space=vmem, size = 0x8000, scoped, tag = 'input window, operand 9, single buffered']
    #allocation11 [shape = 'u8[32768]{0}', space=vmem, size = 0x8000, scoped, tag = 'input window, operand 11, single buffered']
    #allocation12 [shape = 's32[1]{0}', space=sflag, size = 0x4, scoped, tag = 'scoped memory for autoencoder_forward.1']
    #allocation13 [shape = 'u8[4096]{0}', space=vmem, size = 0x1000, scoped, tag = 'output window, operand 0, single buffered']
    %18 = vsyncpa [#allocation3], 0
    %19 = vsyncpa [#allocation6], 0
    %20 = vsyncpa [#allocation9], 0
    %21 = vsyncpa [#allocation12], 0
    %22 = vsyncpa [#allocation4], 0
    // Predicated region
    $region2: #{autoencoder_forward.1} parent=1 // pred_check
      _
    $region3: #{autoencoder_forward.1} parent=1 // pred_check_branch
      %24 = sbr.rel (0) target = $region5
    $region4: #{autoencoder_forward.1} parent=1 // pred_region
      _
    $region5: #{autoencoder_forward.1} parent=1 // pred_fallthru
      _
    // Predicated region
    $region6: #{autoencoder_forward.1} parent=1 // pred_check
      _
    $region7: #{autoencoder_forward.1} parent=1 // pred_check_branch
      %26 = sbr.rel (0) target = $region9
    $region8: #{autoencoder_forward.1} parent=1 // pred_region
      %28 = vsyncadd [#allocation3], 0
      %s29 = sshll.u32 %s1, 4
      %s30 = int_to_ptr.hbm [resolvable:$true] %s29
      %s31 = sshll.u32 [#allocation2], 4
      %s32 = int_to_ptr.vmem [resolvable:$true] %s31
      %37 = dma.hbm_to_vmem [thread:$0]  %s30, 1024, %s32, [#allocation3], 64, 64, 4
    $region9: #{autoencoder_forward.1} parent=1 // pred_fallthru
      _
    // Predicated region
    $region10: #{autoencoder_forward.1} parent=1 // pred_check
      _
    $region11: #{autoencoder_forward.1} parent=1 // pred_check_branch
      %39 = sbr.rel (0) target = $region13
    $region12: #{autoencoder_forward.1} parent=1 // pred_region
      _
    $region13: #{autoencoder_forward.1} parent=1 // pred_fallthru
      _
    // Predicated region
    $region14: #{autoencoder_forward.1} parent=1 // pred_check
      _
    $region15: #{autoencoder_forward.1} parent=1 // pred_check_branch
      %41 = sbr.rel (0) target = $region17
    $region16: #{autoencoder_forward.1} parent=1 // pred_region
      %43 = vsyncadd [#allocation6], 0
      %s44 = sshll.u32 %s3, 4
      %s45 = int_to_ptr.hbm [resolvable:$true] %s44
      %s46 = sshll.u32 [#allocation5], 4
      %s47 = int_to_ptr.vmem [resolvable:$true] %s46
      %52 = dma.hbm_to_vmem [thread:$0]  %s45, 1024, %s47, [#allocation6], 64, 64, 4
    $region17: #{autoencoder_forward.1} parent=1 // pred_fallthru
      _
    // Predicated region
    $region18: #{autoencoder_forward.1} parent=1 // pred_check
      _
    $region19: #{autoencoder_forward.1} parent=1 // pred_check_branch
      %54 = sbr.rel (0) target = $region21
    $region20: #{autoencoder_forward.1} parent=1 // pred_region
      _
    $region21: #{autoencoder_forward.1} parent=1 // pred_fallthru
      _
    // Predicated region
    $region22: #{autoencoder_forward.1} parent=1 // pred_check
      _
    $region23: #{autoencoder_forward.1} parent=1 // pred_check_branch
      %56 = sbr.rel (0) target = $region25
    $region24: #{autoencoder_forward.1} parent=1 // pred_region
      %58 = vsyncadd [#allocation6], 0
      %s59 = sshll.u32 %s5, 4
      %s60 = int_to_ptr.hbm [resolvable:$true] %s59
      %s61 = sshll.u32 [#allocation7], 4
      %s62 = int_to_ptr.vmem [resolvable:$true] %s61
      %67 = dma.hbm_to_vmem [thread:$0]  %s60, 1024, %s62, [#allocation6], 64, 64, 4
    $region25: #{autoencoder_forward.1} parent=1 // pred_fallthru
      _
    // Predicated region
    $region26: #{autoencoder_forward.1} parent=1 // pred_check
      _
    $region27: #{autoencoder_forward.1} parent=1 // pred_check_branch
      %69 = sbr.rel (0) target = $region29
    $region28: #{autoencoder_forward.1} parent=1 // pred_region
      _
    $region29: #{autoencoder_forward.1} parent=1 // pred_fallthru
      _
    // Predicated region
    $region30: #{autoencoder_forward.1} parent=1 // pred_check
      _
    $region31: #{autoencoder_forward.1} parent=1 // pred_check_branch
      %71 = sbr.rel (0) target = $region33
    $region32: #{autoencoder_forward.1} parent=1 // pred_region
      %73 = vsyncadd [#allocation9], 0
      %s74 = sshll.u32 %s7, 4
      %s75 = int_to_ptr.hbm [resolvable:$true] %s74
      %s76 = sshll.u32 [#allocation8], 4
      %s77 = int_to_ptr.vmem [resolvable:$true] %s76
      %82 = dma.hbm_to_vmem [thread:$0]  %s75, 1024, %s77, [#allocation9], 64, 64, 4
    $region33: #{autoencoder_forward.1} parent=1 // pred_fallthru
      _
    // Predicated region
    $region34: #{autoencoder_forward.1} parent=1 // pred_check
      _
    $region35: #{autoencoder_forward.1} parent=1 // pred_check_branch
      %84 = sbr.rel (0) target = $region37
    $region36: #{autoencoder_forward.1} parent=1 // pred_region
      _
    $region37: #{autoencoder_forward.1} parent=1 // pred_fallthru
      _
    // Predicated region
    $region38: #{autoencoder_forward.1} parent=1 // pred_check
      _
    $region39: #{autoencoder_forward.1} parent=1 // pred_check_branch
      %86 = sbr.rel (0) target = $region41
    $region40: #{autoencoder_forward.1} parent=1 // pred_region
      %88 = vsyncadd [#allocation9], 0
      %s89 = sshll.u32 %s9, 4
      %s90 = int_to_ptr.hbm [resolvable:$true] %s89
      %s91 = sshll.u32 [#allocation10], 4
      %s92 = int_to_ptr.vmem [resolvable:$true] %s91
      %97 = dma.hbm_to_vmem [thread:$0]  %s90, 1024, %s92, [#allocation9], 64, 64, 4
    $region41: #{autoencoder_forward.1} parent=1 // pred_fallthru
      _
    // Predicated region
    $region42: #{autoencoder_forward.1} parent=1 // pred_check
      _
    $region43: #{autoencoder_forward.1} parent=1 // pred_check_branch
      %99 = sbr.rel (0) target = $region45
    $region44: #{autoencoder_forward.1} parent=1 // pred_region
      _
    $region45: #{autoencoder_forward.1} parent=1 // pred_fallthru
      _
    // Predicated region
    $region46: #{autoencoder_forward.1} parent=1 // pred_check
      _
    $region47: #{autoencoder_forward.1} parent=1 // pred_check_branch
      %101 = sbr.rel (0) target = $region49
    $region48: #{autoencoder_forward.1} parent=1 // pred_region
      %103 = vsyncadd [#allocation12], 0
      %s104 = sshll.u32 %s11, 4
      %s105 = int_to_ptr.hbm [resolvable:$true] %s104
      %s106 = sshll.u32 [#allocation11], 4
      %s107 = int_to_ptr.vmem [resolvable:$true] %s106
      %112 = dma.hbm_to_vmem [thread:$0]  %s105, 1024, %s107, [#allocation12], 64, 64, 4
    $region49: #{autoencoder_forward.1} parent=1 // pred_fallthru
      _
    // Predicated region
    $region50: #{autoencoder_forward.1} parent=1 // pred_check
      _
    $region51: #{autoencoder_forward.1} parent=1 // pred_check_branch
      %114 = sbr.rel (0) target = $region53
    $region52: #{autoencoder_forward.1} parent=1 // pred_region
      _
    $region53: #{autoencoder_forward.1} parent=1 // pred_fallthru
      _
    // Predicated region
    $region54: #{autoencoder_forward.1} parent=1 // pred_check
      _
    $region55: #{autoencoder_forward.1} parent=1 // pred_check_branch
      %116 = sbr.rel (0) target = $region57
    $region56: #{autoencoder_forward.1} parent=1 // pred_region
      %118 = dma.done [#allocation3], 1024
    $region57: #{autoencoder_forward.1} parent=1 // pred_fallthru
      _
    // Predicated region
    $region58: #{autoencoder_forward.1} parent=1 // pred_check
      _
    $region59: #{autoencoder_forward.1} parent=1 // pred_check_branch
      %120 = sbr.rel (0) target = $region61
    $region60: #{autoencoder_forward.1} parent=1 // pred_region
      %122 = dma.done [#allocation6], 1024
    $region61: #{autoencoder_forward.1} parent=1 // pred_fallthru
      _
    // Predicated region
    $region62: #{autoencoder_forward.1} parent=1 // pred_check
      _
    $region63: #{autoencoder_forward.1} parent=1 // pred_check_branch
      %124 = sbr.rel (0) target = $region65
    $region64: #{autoencoder_forward.1} parent=1 // pred_region
      %126 = dma.done [#allocation6], 1024
    $region65: #{autoencoder_forward.1} parent=1 // pred_fallthru
      _
    // Predicated region
    $region66: #{autoencoder_forward.1} parent=1 // pred_check
      _
    $region67: #{autoencoder_forward.1} parent=1 // pred_check_branch
      %128 = sbr.rel (0) target = $region69
    $region68: #{autoencoder_forward.1} parent=1 // pred_region
      %130 = dma.done [#allocation9], 1024
    $region69: #{autoencoder_forward.1} parent=1 // pred_fallthru
      _
    // Predicated region
    $region70: #{autoencoder_forward.1} parent=1 // pred_check
      _
    $region71: #{autoencoder_forward.1} parent=1 // pred_check_branch
      %132 = sbr.rel (0) target = $region73
    $region72: #{autoencoder_forward.1} parent=1 // pred_region
      %134 = dma.done [#allocation9], 1024
    $region73: #{autoencoder_forward.1} parent=1 // pred_fallthru
      _
    // Predicated region
    $region74: #{autoencoder_forward.1} parent=1 // pred_check
      _
    $region75: #{autoencoder_forward.1} parent=1 // pred_check_branch
      %136 = sbr.rel (0) target = $region77
    $region76: #{autoencoder_forward.1} parent=1 // pred_region
      %138 = dma.done [#allocation12], 1024
    $region77: #{autoencoder_forward.1} parent=1 // pred_fallthru
      _
    %v139 = vld [vmem:[%s0] sm:$0xf]
    %v140 = vld [vmem:[#allocation2] sm:$0xf]
    %v141 = vld [vmem:[#allocation2 + $0x4] sm:$0xf]
    %v142 = vld [vmem:[#allocation2 + $0x8] sm:$0xf]
    %v143 = vld [vmem:[#allocation2 + $0xc] sm:$0xf]
    %v144 = vld [vmem:[#allocation2 + $0x10] sm:$0xf]
    %v145 = vld [vmem:[#allocation2 + $0x14] sm:$0xf]
    %v146 = vld [vmem:[#allocation2 + $0x18] sm:$0xf]
    %v147 = vld [vmem:[#allocation2 + $0x1c] sm:$0xf]
    %v148 = vld [vmem:[#allocation2 + $0x20] sm:$0xf]
    %v149 = vld [vmem:[#allocation2 + $0x24] sm:$0xf]
    %v150 = vld [vmem:[#allocation2 + $0x28] sm:$0xf]
    %v151 = vld [vmem:[#allocation2 + $0x2c] sm:$0xf]
    %v152 = vld [vmem:[#allocation2 + $0x30] sm:$0xf]
    %v153 = vld [vmem:[#allocation2 + $0x34] sm:$0xf]
    %v154 = vld [vmem:[#allocation2 + $0x38] sm:$0xf]
    %v155 = vld [vmem:[#allocation2 + $0x3c] sm:$0xf]
    %v172 = vunpack.c.l.b16 %v140
    %v173 = vunpack.c.l.b16 %v141
    %v174 = vunpack.c.l.b16 %v142
    %v175 = vunpack.c.l.b16 %v143
    %v176 = vunpack.c.l.b16 %v144
    %v177 = vunpack.c.l.b16 %v145
    %v178 = vunpack.c.l.b16 %v146
    %v179 = vunpack.c.l.b16 %v147
    %v180 = vunpack.c.l.b16 %v148
    %v181 = vunpack.c.l.b16 %v149
    %v182 = vunpack.c.l.b16 %v150
    %v183 = vunpack.c.l.b16 %v151
    %v184 = vunpack.c.l.b16 %v152
    %v185 = vunpack.c.l.b16 %v153
    %v186 = vunpack.c.l.b16 %v154
    %v187 = vunpack.c.l.b16 %v155
    %v188 = vpack.c.b16 %v173, %v172
    %v189 = vpack.c.b16 %v175, %v174
    %v190 = vpack.c.b16 %v177, %v176
    %v191 = vpack.c.b16 %v179, %v178
    %v192 = vpack.c.b16 %v181, %v180
    %v193 = vpack.c.b16 %v183, %v182
    %v194 = vpack.c.b16 %v185, %v184
    %v195 = vpack.c.b16 %v187, %v186
    %204 = vmatpush.bf16.msra.mxu0 %v195
    %205 = vmatpush.bf16.msra.mxu0 %v194
    %206 = vmatpush.bf16.msra.mxu0 %v193
    %207 = vmatpush.bf16.msra.mxu0 %v192
    %208 = vmatpush.bf16.msra.mxu0 %v191
    %209 = vmatpush.bf16.msra.mxu0 %v190
    %210 = vmatpush.bf16.msra.mxu0 %v189
    %211 = vmatpush.bf16.msra.mxu0 %v188
    %212 = vmatmul.bf16.gmra.mxu0 %v139
    %v213 = vpop.f32.mrf.mxu0
    %v214 = vadd.f32 0.0, %v213
    %v215 = vpop.f32.mrf.mxu0
    %216 = vdwg.mxu0
    %v217 = vpack.c.bf16 %v214, %v214
    %v218 = vld [vmem:[%s2] sm:$0x1]
    %v220 = vpack.i.b16 %v218, %v218
    %v222 = vperm.slane %v220, 0
    %v223 = vunpack.c.l.bf16 %v217
    %v224 = vunpack.c.l.bf16 %v222
    %v225 = vadd.f32 %v223, %v224
    %v226 = vpack.c.bf16 %v225, %v225
    %v227 = vunpack.c.l.bf16 %v226
    %v228 = vmax.f32 %v227, 0.0
    %v229 = vpack.c.bf16 %v228, %v228
    %v230 = vld [vmem:[#allocation5] sm:$0xf]
    %v231 = vld [vmem:[#allocation5 + $0x4] sm:$0xf]
    %v232 = vld [vmem:[#allocation5 + $0x8] sm:$0xf]
    %v233 = vld [vmem:[#allocation5 + $0xc] sm:$0xf]
    %v234 = vld [vmem:[#allocation5 + $0x10] sm:$0xf]
    %v235 = vld [vmem:[#allocation5 + $0x14] sm:$0xf]
    %v236 = vld [vmem:[#allocation5 + $0x18] sm:$0xf]
    %v237 = vld [vmem:[#allocation5 + $0x1c] sm:$0xf]
    %v238 = vld [vmem:[#allocation5 + $0x20] sm:$0xf]
    %v239 = vld [vmem:[#allocation5 + $0x24] sm:$0xf]
    %v240 = vld [vmem:[#allocation5 + $0x28] sm:$0xf]
    %v241 = vld [vmem:[#allocation5 + $0x2c] sm:$0xf]
    %v242 = vld [vmem:[#allocation5 + $0x30] sm:$0xf]
    %v243 = vld [vmem:[#allocation5 + $0x34] sm:$0xf]
    %v244 = vld [vmem:[#allocation5 + $0x38] sm:$0xf]
    %v245 = vld [vmem:[#allocation5 + $0x3c] sm:$0xf]
    %v262 = vunpack.c.l.b16 %v230
    %v263 = vunpack.c.l.b16 %v231
    %v264 = vunpack.c.l.b16 %v232
    %v265 = vunpack.c.l.b16 %v233
    %v266 = vunpack.c.l.b16 %v234
    %v267 = vunpack.c.l.b16 %v235
    %v268 = vunpack.c.l.b16 %v236
    %v269 = vunpack.c.l.b16 %v237
    %v270 = vunpack.c.l.b16 %v238
    %v271 = vunpack.c.l.b16 %v239
    %v272 = vunpack.c.l.b16 %v240
    %v273 = vunpack.c.l.b16 %v241
    %v274 = vunpack.c.l.b16 %v242
    %v275 = vunpack.c.l.b16 %v243
    %v276 = vunpack.c.l.b16 %v244
    %v277 = vunpack.c.l.b16 %v245
    %v278 = vpack.c.b16 %v263, %v262
    %v279 = vpack.c.b16 %v265, %v264
    %v280 = vpack.c.b16 %v267, %v266
    %v281 = vpack.c.b16 %v269, %v268
    %v282 = vpack.c.b16 %v271, %v270
    %v283 = vpack.c.b16 %v273, %v272
    %v284 = vpack.c.b16 %v275, %v274
    %v285 = vpack.c.b16 %v277, %v276
    %294 = vmatpush.bf16.msra.mxu0 %v285
    %295 = vmatpush.bf16.msra.mxu0 %v284
    %296 = vmatpush.bf16.msra.mxu0 %v283
    %297 = vmatpush.bf16.msra.mxu0 %v282
    %298 = vmatpush.bf16.msra.mxu0 %v281
    %299 = vmatpush.bf16.msra.mxu0 %v280
    %300 = vmatpush.bf16.msra.mxu0 %v279
    %301 = vmatpush.bf16.msra.mxu0 %v278
    %302 = vmatmul.bf16.gmra.mxu0 %v229
    %v303 = vpop.f32.mrf.mxu0
    %v304 = vadd.f32 0.0, %v303
    %v305 = vpop.f32.mrf.mxu0
    %306 = vdwg.mxu0
    %v307 = vpack.c.bf16 %v304, %v304
    %v308 = vld [vmem:[%s4] sm:$0x1]
    %v310 = vpack.i.b16 %v308, %v308
    %v312 = vperm.slane %v310, 0
    %v313 = vunpack.c.l.bf16 %v307
    %v314 = vunpack.c.l.bf16 %v312
    %v315 = vadd.f32 %v313, %v314
    %v316 = vpack.c.bf16 %v315, %v315
    %v317 = vunpack.c.l.bf16 %v316
    %v318 = vmax.f32 %v317, 0.0
    %v319 = vpack.c.bf16 %v318, %v318
    %v320 = vld [vmem:[#allocation7] sm:$0xf]
    %v321 = vld [vmem:[#allocation7 + $0x4] sm:$0xf]
    %v322 = vld [vmem:[#allocation7 + $0x8] sm:$0xf]
    %v323 = vld [vmem:[#allocation7 + $0xc] sm:$0xf]
    %v324 = vld [vmem:[#allocation7 + $0x10] sm:$0xf]
    %v325 = vld [vmem:[#allocation7 + $0x14] sm:$0xf]
    %v326 = vld [vmem:[#allocation7 + $0x18] sm:$0xf]
    %v327 = vld [vmem:[#allocation7 + $0x1c] sm:$0xf]
    %v328 = vld [vmem:[#allocation7 + $0x20] sm:$0xf]
    %v329 = vld [vmem:[#allocation7 + $0x24] sm:$0xf]
    %v330 = vld [vmem:[#allocation7 + $0x28] sm:$0xf]
    %v331 = vld [vmem:[#allocation7 + $0x2c] sm:$0xf]
    %v332 = vld [vmem:[#allocation7 + $0x30] sm:$0xf]
    %v333 = vld [vmem:[#allocation7 + $0x34] sm:$0xf]
    %v334 = vld [vmem:[#allocation7 + $0x38] sm:$0xf]
    %v335 = vld [vmem:[#allocation7 + $0x3c] sm:$0xf]
    %v352 = vunpack.c.l.b16 %v320
    %v353 = vunpack.c.l.b16 %v321
    %v354 = vunpack.c.l.b16 %v322
    %v355 = vunpack.c.l.b16 %v323
    %v356 = vunpack.c.l.b16 %v324
    %v357 = vunpack.c.l.b16 %v325
    %v358 = vunpack.c.l.b16 %v326
    %v359 = vunpack.c.l.b16 %v327
    %v360 = vunpack.c.l.b16 %v328
    %v361 = vunpack.c.l.b16 %v329
    %v362 = vunpack.c.l.b16 %v330
    %v363 = vunpack.c.l.b16 %v331
    %v364 = vunpack.c.l.b16 %v332
    %v365 = vunpack.c.l.b16 %v333
    %v366 = vunpack.c.l.b16 %v334
    %v367 = vunpack.c.l.b16 %v335
    %v368 = vpack.c.b16 %v353, %v352
    %v369 = vpack.c.b16 %v355, %v354
    %v370 = vpack.c.b16 %v357, %v356
    %v371 = vpack.c.b16 %v359, %v358
    %v372 = vpack.c.b16 %v361, %v360
    %v373 = vpack.c.b16 %v363, %v362
    %v374 = vpack.c.b16 %v365, %v364
    %v375 = vpack.c.b16 %v367, %v366
    %384 = vmatpush.bf16.msra.mxu0 %v375
    %385 = vmatpush.bf16.msra.mxu0 %v374
    %386 = vmatpush.bf16.msra.mxu0 %v373
    %387 = vmatpush.bf16.msra.mxu0 %v372
    %388 = vmatpush.bf16.msra.mxu0 %v371
    %389 = vmatpush.bf16.msra.mxu0 %v370
    %390 = vmatpush.bf16.msra.mxu0 %v369
    %391 = vmatpush.bf16.msra.mxu0 %v368
    %392 = vmatmul.bf16.gmra.mxu0 %v319
    %v393 = vpop.f32.mrf.mxu0
    %v394 = vadd.f32 0.0, %v393
    %v395 = vpop.f32.mrf.mxu0
    %396 = vdwg.mxu0
    %v397 = vpack.c.bf16 %v394, %v394
    %v398 = vld [vmem:[%s6] sm:$0x1]
    %v400 = vpack.i.b16 %v398, %v398
    %v402 = vperm.slane %v400, 0
    %v403 = vunpack.c.l.bf16 %v397
    %v404 = vunpack.c.l.bf16 %v402
    %v405 = vadd.f32 %v403, %v404
    %v406 = vpack.c.bf16 %v405, %v405
    %v407 = vld [vmem:[#allocation8] sm:$0xf]
    %v408 = vld [vmem:[#allocation8 + $0x4] sm:$0xf]
    %v409 = vld [vmem:[#allocation8 + $0x8] sm:$0xf]
    %v410 = vld [vmem:[#allocation8 + $0xc] sm:$0xf]
    %v411 = vld [vmem:[#allocation8 + $0x10] sm:$0xf]
    %v412 = vld [vmem:[#allocation8 + $0x14] sm:$0xf]
    %v413 = vld [vmem:[#allocation8 + $0x18] sm:$0xf]
    %v414 = vld [vmem:[#allocation8 + $0x1c] sm:$0xf]
    %v415 = vld [vmem:[#allocation8 + $0x20] sm:$0xf]
    %v416 = vld [vmem:[#allocation8 + $0x24] sm:$0xf]
    %v417 = vld [vmem:[#allocation8 + $0x28] sm:$0xf]
    %v418 = vld [vmem:[#allocation8 + $0x2c] sm:$0xf]
    %v419 = vld [vmem:[#allocation8 + $0x30] sm:$0xf]
    %v420 = vld [vmem:[#allocation8 + $0x34] sm:$0xf]
    %v421 = vld [vmem:[#allocation8 + $0x38] sm:$0xf]
    %v422 = vld [vmem:[#allocation8 + $0x3c] sm:$0xf]
    %v439 = vunpack.c.l.b16 %v407
    %v440 = vunpack.c.l.b16 %v408
    %v441 = vunpack.c.l.b16 %v409
    %v442 = vunpack.c.l.b16 %v410
    %v443 = vunpack.c.l.b16 %v411
    %v444 = vunpack.c.l.b16 %v412
    %v445 = vunpack.c.l.b16 %v413
    %v446 = vunpack.c.l.b16 %v414
    %v447 = vunpack.c.l.b16 %v415
    %v448 = vunpack.c.l.b16 %v416
    %v449 = vunpack.c.l.b16 %v417
    %v450 = vunpack.c.l.b16 %v418
    %v451 = vunpack.c.l.b16 %v419
    %v452 = vunpack.c.l.b16 %v420
    %v453 = vunpack.c.l.b16 %v421
    %v454 = vunpack.c.l.b16 %v422
    %v455 = vpack.c.b16 %v440, %v439
    %v456 = vpack.c.b16 %v442, %v441
    %v457 = vpack.c.b16 %v444, %v443
    %v458 = vpack.c.b16 %v446, %v445
    %v459 = vpack.c.b16 %v448, %v447
    %v460 = vpack.c.b16 %v450, %v449
    %v461 = vpack.c.b16 %v452, %v451
    %v462 = vpack.c.b16 %v454, %v453
    %471 = vmatpush.bf16.msra.mxu0 %v462
    %472 = vmatpush.bf16.msra.mxu0 %v461
    %473 = vmatpush.bf16.msra.mxu0 %v460
    %474 = vmatpush.bf16.msra.mxu0 %v459
    %475 = vmatpush.bf16.msra.mxu0 %v458
    %476 = vmatpush.bf16.msra.mxu0 %v457
    %477 = vmatpush.bf16.msra.mxu0 %v456
    %478 = vmatpush.bf16.msra.mxu0 %v455
    %479 = vmatmul.bf16.gmra.mxu0 %v406
    %v480 = vpop.f32.mrf.mxu0
    %v481 = vadd.f32 0.0, %v480
    %v482 = vpop.f32.mrf.mxu0
    %483 = vdwg.mxu0
    %v484 = vpack.c.bf16 %v481, %v481
    %v485 = vld [vmem:[%s8] sm:$0x1]
    %v487 = vpack.i.b16 %v485, %v485
    %v489 = vperm.slane %v487, 0
    %v490 = vunpack.c.l.bf16 %v484
    %v491 = vunpack.c.l.bf16 %v489
    %v492 = vadd.f32 %v490, %v491
    %v493 = vpack.c.bf16 %v492, %v492
    %v494 = vunpack.c.l.bf16 %v493
    %v495 = vmax.f32 %v494, 0.0
    %v496 = vpack.c.bf16 %v495, %v495
    %v497 = vld [vmem:[#allocation10] sm:$0xf]
    %v498 = vld [vmem:[#allocation10 + $0x4] sm:$0xf]
    %v499 = vld [vmem:[#allocation10 + $0x8] sm:$0xf]
    %v500 = vld [vmem:[#allocation10 + $0xc] sm:$0xf]
    %v501 = vld [vmem:[#allocation10 + $0x10] sm:$0xf]
    %v502 = vld [vmem:[#allocation10 + $0x14] sm:$0xf]
    %v503 = vld [vmem:[#allocation10 + $0x18] sm:$0xf]
    %v504 = vld [vmem:[#allocation10 + $0x1c] sm:$0xf]
    %v505 = vld [vmem:[#allocation10 + $0x20] sm:$0xf]
    %v506 = vld [vmem:[#allocation10 + $0x24] sm:$0xf]
    %v507 = vld [vmem:[#allocation10 + $0x28] sm:$0xf]
    %v508 = vld [vmem:[#allocation10 + $0x2c] sm:$0xf]
    %v509 = vld [vmem:[#allocation10 + $0x30] sm:$0xf]
    %v510 = vld [vmem:[#allocation10 + $0x34] sm:$0xf]
    %v511 = vld [vmem:[#allocation10 + $0x38] sm:$0xf]
    %v512 = vld [vmem:[#allocation10 + $0x3c] sm:$0xf]
    %v529 = vunpack.c.l.b16 %v497
    %v530 = vunpack.c.l.b16 %v498
    %v531 = vunpack.c.l.b16 %v499
    %v532 = vunpack.c.l.b16 %v500
    %v533 = vunpack.c.l.b16 %v501
    %v534 = vunpack.c.l.b16 %v502
    %v535 = vunpack.c.l.b16 %v503
    %v536 = vunpack.c.l.b16 %v504
    %v537 = vunpack.c.l.b16 %v505
    %v538 = vunpack.c.l.b16 %v506
    %v539 = vunpack.c.l.b16 %v507
    %v540 = vunpack.c.l.b16 %v508
    %v541 = vunpack.c.l.b16 %v509
    %v542 = vunpack.c.l.b16 %v510
    %v543 = vunpack.c.l.b16 %v511
    %v544 = vunpack.c.l.b16 %v512
    %v545 = vpack.c.b16 %v530, %v529
    %v546 = vpack.c.b16 %v532, %v531
    %v547 = vpack.c.b16 %v534, %v533
    %v548 = vpack.c.b16 %v536, %v535
    %v549 = vpack.c.b16 %v538, %v537
    %v550 = vpack.c.b16 %v540, %v539
    %v551 = vpack.c.b16 %v542, %v541
    %v552 = vpack.c.b16 %v544, %v543
    %561 = vmatpush.bf16.msra.mxu0 %v552
    %562 = vmatpush.bf16.msra.mxu0 %v551
    %563 = vmatpush.bf16.msra.mxu0 %v550
    %564 = vmatpush.bf16.msra.mxu0 %v549
    %565 = vmatpush.bf16.msra.mxu0 %v548
    %566 = vmatpush.bf16.msra.mxu0 %v547
    %567 = vmatpush.bf16.msra.mxu0 %v546
    %568 = vmatpush.bf16.msra.mxu0 %v545
    %569 = vmatmul.bf16.gmra.mxu0 %v496
    %v570 = vpop.f32.mrf.mxu0
    %v571 = vadd.f32 0.0, %v570
    %v572 = vpop.f32.mrf.mxu0
    %573 = vdwg.mxu0
    %v574 = vpack.c.bf16 %v571, %v571
    %v575 = vld [vmem:[%s10] sm:$0x1]
    %v577 = vpack.i.b16 %v575, %v575
    %v579 = vperm.slane %v577, 0
    %v580 = vunpack.c.l.bf16 %v574
    %v581 = vunpack.c.l.bf16 %v579
    %v582 = vadd.f32 %v580, %v581
    %v583 = vpack.c.bf16 %v582, %v582
    %v584 = vunpack.c.l.bf16 %v583
    %v585 = vmax.f32 %v584, 0.0
    %v586 = vpack.c.bf16 %v585, %v585
    %v587 = vld [vmem:[#allocation11] sm:$0xf]
    %v588 = vld [vmem:[#allocation11 + $0x4] sm:$0xf]
    %v589 = vld [vmem:[#allocation11 + $0x8] sm:$0xf]
    %v590 = vld [vmem:[#allocation11 + $0xc] sm:$0xf]
    %v591 = vld [vmem:[#allocation11 + $0x10] sm:$0xf]
    %v592 = vld [vmem:[#allocation11 + $0x14] sm:$0xf]
    %v593 = vld [vmem:[#allocation11 + $0x18] sm:$0xf]
    %v594 = vld [vmem:[#allocation11 + $0x1c] sm:$0xf]
    %v595 = vld [vmem:[#allocation11 + $0x20] sm:$0xf]
    %v596 = vld [vmem:[#allocation11 + $0x24] sm:$0xf]
    %v597 = vld [vmem:[#allocation11 + $0x28] sm:$0xf]
    %v598 = vld [vmem:[#allocation11 + $0x2c] sm:$0xf]
    %v599 = vld [vmem:[#allocation11 + $0x30] sm:$0xf]
    %v600 = vld [vmem:[#allocation11 + $0x34] sm:$0xf]
    %v601 = vld [vmem:[#allocation11 + $0x38] sm:$0xf]
    %v602 = vld [vmem:[#allocation11 + $0x3c] sm:$0xf]
    %v603 = vld [vmem:[%s12] sm:$0x1]
    %v604 = vunpack.c.l.bf16 %v603
    %v605 = vperm.slane %v604, 0
    %v622 = vunpack.c.l.b16 %v587
    %v623 = vunpack.c.l.b16 %v588
    %v624 = vunpack.c.l.b16 %v589
    %v625 = vunpack.c.l.b16 %v590
    %v626 = vunpack.c.l.b16 %v591
    %v627 = vunpack.c.l.b16 %v592
    %v628 = vunpack.c.l.b16 %v593
    %v629 = vunpack.c.l.b16 %v594
    %v630 = vunpack.c.l.b16 %v595
    %v631 = vunpack.c.l.b16 %v596
    %v632 = vunpack.c.l.b16 %v597
    %v633 = vunpack.c.l.b16 %v598
    %v634 = vunpack.c.l.b16 %v599
    %v635 = vunpack.c.l.b16 %v600
    %v636 = vunpack.c.l.b16 %v601
    %v637 = vunpack.c.l.b16 %v602
    %v638 = vpack.c.b16 %v623, %v622
    %v639 = vpack.c.b16 %v625, %v624
    %v640 = vpack.c.b16 %v627, %v626
    %v641 = vpack.c.b16 %v629, %v628
    %v642 = vpack.c.b16 %v631, %v630
    %v643 = vpack.c.b16 %v633, %v632
    %v644 = vpack.c.b16 %v635, %v634
    %v645 = vpack.c.b16 %v637, %v636
    %654 = vmatpush.bf16.msra.mxu0 %v645
    %655 = vmatpush.bf16.msra.mxu0 %v644
    %656 = vmatpush.bf16.msra.mxu0 %v643
    %657 = vmatpush.bf16.msra.mxu0 %v642
    %658 = vmatpush.bf16.msra.mxu0 %v641
    %659 = vmatpush.bf16.msra.mxu0 %v640
    %660 = vmatpush.bf16.msra.mxu0 %v639
    %661 = vmatpush.bf16.msra.mxu0 %v638
    %662 = vmatmul.bf16.gmra.mxu0 %v586
    %v663 = vpop.f32.mrf.mxu0
    %v664 = vadd.f32 %v605, %v663
    %v665 = vpop.f32.mrf.mxu0
    %666 = vdwg.mxu0
    %v667 = vmul.f32 %v664, 0.5
    %v668 = vtanh.pop %v667
    %v669 = vmul.f32 %v668, 0.5
    %v670 = vadd.f32 %v669, 0.5
    %671 = vst [vmem:[#allocation13] sm:$0xff] %v670
    // Predicated region
    $region78: #{autoencoder_forward.1} parent=1 // pred_check
      _
    $region79: #{autoencoder_forward.1} parent=1 // pred_check_branch
      %673 = sbr.rel (0) target = $region81
    $region80: #{autoencoder_forward.1} parent=1 // pred_region
      %675 = vsyncadd [#allocation4], 0
      %s677 = sshll.u32 [#allocation13], 4
      %s678 = int_to_ptr.vmem [resolvable:$true] %s677
      %s679 = sshll.u32 %s13, 4
      %s680 = int_to_ptr.hbm [resolvable:$true] %s679
      %682 = dma.vmem_to_hbm [thread:$0]  %s678, 128, %s680, [#allocation4]
    $region81: #{autoencoder_forward.1} parent=1 // pred_fallthru
      _
    // Predicated region
    $region82: #{autoencoder_forward.1} parent=1 // pred_check
      _
    $region83: #{autoencoder_forward.1} parent=1 // pred_check_branch
      %684 = sbr.rel (0) target = $region85
    $region84: #{autoencoder_forward.1} parent=1 // pred_region
      %686 = dma.done [#allocation4], 128
    $region85: #{autoencoder_forward.1} parent=1 // pred_fallthru
      _
    %687 = vsyncpa [#allocation3], 1
    %688 = vsyncpa [#allocation6], 1
    %689 = vsyncpa [#allocation9], 1
    %690 = vsyncpa [#allocation12], 1
    %691 = vsyncpa [#allocation4], 1

</llo_original>
